<compile_context>
chip_gen: v7x
topology: tpu7x:2x2x1
jax: 0.10.0
libtpu: 0.0.40
codegen_flags: <defaults>
</compile_context>

<pallas_src>
import jax
import jax.numpy as jnp
from jax.experimental import pallas as pl
from jax.experimental.pallas import tpu as pltpu


def _round_up(x, m):
    return ((x + m - 1) // m) * m


def _regression_head_kernel(x_ref, w_ref, b_ref, o_ref):
    # x_ref: (tm, d_model) VMEM tile; w_ref: (1, d_model) VMEM (resident);
    # b_ref: (1,) SMEM scalar; o_ref: (1, tm) VMEM tile (lane-dense).
    acc = jax.lax.dot_general(
        w_ref[...], x_ref[...],
        dimension_numbers=(((1,), (1,)), ((), ())),   # contract d_model of both
        preferred_element_type=jnp.float32,
    )                                                 # -> (1, tm), f32 accum
    o_ref[...] = (acc + b_ref[0]).astype(o_ref.dtype)


def _vmem_budget_and_limit():
    """Generation-aware resident-buffer budget and scoped-VMEM limit."""
    try:
        cap = int(pltpu.get_tpu_info().vmem_capacity_bytes)
    except Exception:
        cap = 64 * 1024 * 1024          # conservative (v7x per-TC VMEM)
    budget = min(cap // 2, 48 * 1024 * 1024)       # v7x ~32 MiB, v5e/v6e 48 MiB
    limit = int(min(cap * 3 // 4, 100 * 1024 * 1024))
    return budget, limit


def _choose_tm(rows, d_model, x_itemsize, out_itemsize, budget_bytes):
    """Row-tile size from real (lane-padded) VMEM footprints.

    Resident VMEM = 2 double-buffered x tiles (tm x round_up(d_model,128))
                  + 2 lane-dense out tiles (8 sublanes x tm)
                  + the resident (1, d_model) weight row.
    """
    d_pad = _round_up(d_model, 128)
    fixed = 2 * 8 * d_pad * x_itemsize                      # weight buffers
    avail = max(budget_bytes - fixed, 1 << 20)
    per_row = 2 * d_pad * x_itemsize + 2 * 8 * out_itemsize
    tm_fit = max(128, avail // per_row)                     # fits the budget
    tm_2mib = max(128, (2 * 1024 * 1024) // (d_pad * x_itemsize))  # >=~2MiB tile
    tm_steps = rows // 8                                    # aim for >=~8 steps

    tm = min(tm_steps, tm_fit)
    tm = max(tm, min(tm_2mib, tm_fit))          # tile-size floor wins over step count
    tm = max(128, (tm // 128) * 128)            # lane-dense out block + sublane packing
    if tm >= rows:
        return rows                             # single full-extent block
    return tm


def regression_head(x, weight, bias, *, tm=None):
    """x: (..., d_model); weight: (1, d_model); bias: (1,). Returns (..., 1)."""
    d_model = x.shape[-1]
    lead_shape = x.shape[:-1]
    rows = 1
    for s in lead_shape:
        rows *= s

    x2d = x.reshape(rows, d_model)
    w = weight.reshape(1, d_model).astype(x.dtype)   # lane-major, VMEM-resident
    b = bias.reshape(1).astype(jnp.float32)          # scalar, lives in SMEM

    x_isize = jnp.dtype(x.dtype).itemsize
    o_isize = x_isize

    budget, vmem_limit = _vmem_budget_and_limit()
    if tm is None:
        tm = _choose_tm(rows, d_model, x_isize, o_isize, budget)
    else:
        tm = int(tm)
        if tm < rows:
            tm = max(128, (tm // 128) * 128)     # lane-dense out block needs /128
        tm = min(tm, rows)

    grid = (pl.cdiv(rows, tm),)                  # ragged last block handled by Pallas

    cost = pl.CostEstimate(
        flops=2 * rows * d_model,
        transcendentals=0,
        bytes_accessed=rows * d_model * x_isize + d_model * x_isize + rows * o_isize,
    )

    out = pl.pallas_call(
        _regression_head_kernel,
        out_shape=jax.ShapeDtypeStruct((1, rows), x.dtype),
        grid_spec=pltpu.PrefetchScalarGridSpec(
            num_scalar_prefetch=0,
            grid=grid,
            in_specs=[
                # x tile streams along the row axis (double-buffered by Pallas).
                pl.BlockSpec((tm, d_model), lambda i: (i, 0)),
                # weight row stays resident across all grid steps.
                pl.BlockSpec((1, d_model), lambda i: (0, 0)),
                # bias scalar in SMEM (no padded VMEM block, no pipelining).
                pl.BlockSpec(memory_space=pltpu.MemorySpace.SMEM),
            ],
            out_specs=pl.BlockSpec((1, tm), lambda i: (0, i)),   # lane-dense store
        ),
        compiler_params=pltpu.CompilerParams(
            dimension_semantics=("parallel",),
            vmem_limit_bytes=vmem_limit,
        ),
        cost_estimate=cost,
    )(x2d, w, b)

    return out.reshape(*lead_shape, 1)


def init_regression_head_params(key, d_model):
    """Mirror RegressionHead.init_weights: weight ~ U(-0.1, 0.1), bias = 0."""
    initrange = 0.1
    weight = jax.random.uniform(
        key, (1, d_model), minval=-initrange, maxval=initrange,
        dtype=jnp.float32)
    bias = jnp.zeros((1,), dtype=jnp.float32)
    return weight, bias


if __name__ == "__main__":
    key = jax.random.PRNGKey(0)
    k_x, k_w = jax.random.split(key)

    batch, seq, d_model = 2, 8, 32
    x = jax.random.normal(k_x, (batch, seq, d_model), dtype=jnp.float32)
    weight, bias = init_regression_head_params(k_w, d_model)

    # Default (auto-sized) row tile: rows=16 -> single full-extent block.
    out = regression_head(x, weight, bias)
    jax.block_until_ready(out)
    ref = x @ weight.T + bias
    assert out.shape == (batch, seq, 1), out.shape
    assert jnp.allclose(out, ref, atol=1e-5, rtol=1e-5), "mismatch vs reference"

    # Multi-step grid + ragged last block: rows=150, tm=128 -> grid=2, the
    # final partial block is read padded and write-masked (no wrapper pad).
    x2 = jax.random.normal(jax.random.PRNGKey(1), (3, 50, d_model),
                           dtype=jnp.float32)
    out2 = regression_head(x2, weight, bias, tm=128)
    jax.block_until_ready(out2)
    ref2 = x2 @ weight.T + bias
    assert out2.shape == (3, 50, 1), out2.shape
    assert jnp.allclose(out2, ref2, atol=1e-5, rtol=1e-5), "mismatch (tiled/ragged)"

    print("KERNEL_OK")
</pallas_src>

<mosaic_0001>
module attributes {stable_mosaic.version = 11 : i64} {
  func.func @_regression_head_kernel(%arg0: i32, %arg1: memref<16x32xf32, #tpu.memory_space<vmem>>, %arg2: memref<1x32xf32, #tpu.memory_space<vmem>>, %arg3: memref<1xf32, #tpu.memory_space<smem>>, %arg4: memref<1x16xf32, #tpu.memory_space<vmem>>) attributes {dimension_semantics = [#tpu.dimension_semantics<parallel>], iteration_bounds = array<i64: 1>, scalar_prefetch = 0 : i64, scratch_operands = 0 : i64, tpu.core_type = #tpu.core_type<tc>, window_params = [{transform_indices = @transform_0, window_bounds = array<i64: 16, 32>}, {pipeline_mode = #tpu.pipeline_mode<synchronous>, transform_indices = @transform_1, window_bounds = array<i64: 1, 32>}, {transform_indices = @transform_2, window_bounds = array<i64: 1>}, {transform_indices = @transform_3, window_bounds = array<i64: 1, 16>}]} {
    %c0 = arith.constant 0 : index
    %c0_0 = arith.constant 0 : index
    %0 = vector.load %arg2[%c0, %c0_0] : memref<1x32xf32, #tpu.memory_space<vmem>>, vector<1x32xf32>
    %c0_1 = arith.constant 0 : index
    %c0_2 = arith.constant 0 : index
    %1 = vector.load %arg1[%c0_1, %c0_2] : memref<16x32xf32, #tpu.memory_space<vmem>>, vector<16x32xf32>
    %cst = arith.constant dense<0.000000e+00> : vector<1x16xf32>
    %2 = tpu.matmul %0, %1, %cst {dimension_numbers = #tpu.dot_dimension_numbers<[1], [1], [0], [0], [0, 0, 1, 0], [], []>} : vector<1x32xf32>, vector<16x32xf32>, vector<1x16xf32> -> vector<1x16xf32>
    %c0_3 = arith.constant 0 : index
    %3 = memref.load %arg3[%c0_3] : memref<1xf32, #tpu.memory_space<smem>>
    %4 = vector.broadcast %3 : f32 to vector<1x16xf32>
    %5 = arith.addf %2, %4 : vector<1x16xf32>
    %c0_4 = arith.constant 0 : index
    %c0_5 = arith.constant 0 : index
    %6 = vector.load %arg4[%c0_4, %c0_5] : memref<1x16xf32, #tpu.memory_space<vmem>>, vector<1x16xf32>
    tpu.vector_store %arg4[%c0_4, %c0_5], %5 {strides = array<i32>} : memref<1x16xf32, #tpu.memory_space<vmem>>, vector<1x16xf32>,
    return
  }
  func.func @transform_0(%arg0: i32) -> (i32, i32) {
    %c0_i32 = arith.constant 0 : i32
    %c0_i32_0 = arith.constant 0 : i32
    return %arg0, %c0_i32 : i32, i32
  }
  func.func @transform_1(%arg0: i32) -> (i32, i32) {
    %c0_i32 = arith.constant 0 : i32
    %c0_i32_0 = arith.constant 0 : i32
    %c0_i32_1 = arith.constant 0 : i32
    return %c0_i32, %c0_i32_0 : i32, i32
  }
  func.func @transform_2(%arg0: i32) -> i32 {
    %c0_i32 = arith.constant 0 : i32
    %c0_i32_0 = arith.constant 0 : i32
    return %c0_i32 : i32
  }
  func.func @transform_3(%arg0: i32) -> (i32, i32) {
    %c0_i32 = arith.constant 0 : i32
    %c0_i32_0 = arith.constant 0 : i32
    return %c0_i32, %arg0 : i32, i32
  }
}

</mosaic_0001>

<llo_original>
// kernel: tpu_custom_call.1
$region0: #{tpu_custom_call.1}
  #allocation0 [shape = 'u32[]', space=smem, size = 0x4, offset = 0x4, fixed_abs, tag = 'smem constant byte address 0x4 - core index']
  #allocation1 [shape = 'u32[144,128]{1,0:T(1,128)}', space=vmem, size = 0x12000, scoped, tag = 'internal scratch']
  #allocation2 [shape = 'f32[1]{0:T(128)S(6)}', space=smem, size = 0x200, scoped, tag = 'scoped memory for tpu_custom_call.1']
  %s0 = inlined_call_operand.hbm [shape: f32[16,32], index: 0, kind: input, shape index: {}]
  %s1 = inlined_call_operand.vmem [shape: f32[1,32], index: 1, kind: input, shape index: {}]
  %s2 = inlined_call_operand.<no memory space> [shape: f32[1], index: 2, kind: input, shape index: {}]
  %s3 = inlined_call_operand.hbm [shape: f32[1,16], index: 3, kind: output, shape index: {}]
  %s4 = sld [smem:[#allocation0]]
  $region26: #{tpu_custom_call.1} parent=0
    _
  %s6 = ssub.s32 1, %s4
  %s7 = scalar_select 0, %s6, %s4
  %8 = sst [smem:[#allocation2]] %s2
  $region1: #{tpu_custom_call.1} parent=0
    #allocation3 [shape = 'u8[8192]{0}', space=vmem, size = 0x2000, scoped, tag = 'input window, operand 0, single buffered']
    #allocation4 [shape = 's32[1]{0}', space=sflag, size = 0x4, scoped, tag = 'scoped memory for tpu_custom_call.1']
    #allocation5 [shape = 's32[1]{0}', space=sflag, size = 0x4, scoped, tag = 'scoped memory for tpu_custom_call.1']
    #allocation6 [shape = 'u8[512]{0}', space=vmem, size = 0x400, scoped, tag = 'output window, operand 0, single buffered']
    %9 = vsyncpa [#allocation4], 0
    %10 = vsyncpa [#allocation5], 0
    // Predicated region
    $region2: #{tpu_custom_call.1} parent=1 // pred_check
      _
    $region3: #{tpu_custom_call.1} parent=1 // pred_check_branch
      %12 = sbr.rel (0) target = $region5
    $region4: #{tpu_custom_call.1} parent=1 // pred_region
      %s14 = ssub.s32 256, 256
      %15 = vsyncadd [#allocation4], %s14
      %s16 = sshll.u32 [#allocation3], 4
      %s17 = int_to_ptr.vmem [resolvable:$true] %s16
      %22 = dma.hbm_to_vmem [thread:$0]  %s0, 256, %s17, [#allocation4], 128, 128, 8
    $region5: #{tpu_custom_call.1} parent=1 // pred_fallthru
      _
    // Predicated region
    $region6: #{tpu_custom_call.1} parent=1 // pred_check
      _
    $region7: #{tpu_custom_call.1} parent=1 // pred_check_branch
      %24 = sbr.rel (0) target = $region9
    $region8: #{tpu_custom_call.1} parent=1 // pred_region
      _
    $region9: #{tpu_custom_call.1} parent=1 // pred_fallthru
      _
    // Predicated region
    $region10: #{tpu_custom_call.1} parent=1 // pred_check
      _
    $region11: #{tpu_custom_call.1} parent=1 // pred_check_branch
      %26 = sbr.rel (0) target = $region13
    $region12: #{tpu_custom_call.1} parent=1 // pred_region
      _
    $region13: #{tpu_custom_call.1} parent=1 // pred_fallthru
      _
    // Predicated region
    $region14: #{tpu_custom_call.1} parent=1 // pred_check
      _
    $region15: #{tpu_custom_call.1} parent=1 // pred_check_branch
      %28 = sbr.rel (0) target = $region17
    $region16: #{tpu_custom_call.1} parent=1 // pred_region
      %29 = dma.done [#allocation4], 256
    $region17: #{tpu_custom_call.1} parent=1 // pred_fallthru
      _
    %v30 = vld [vmem:[%s1] sm:$0x1]
    %v31 = vld [vmem:[#allocation3] sm:$0xff]
    %v32 = vld [vmem:[#allocation3 + $0x8] sm:$0xff]
    %s33 = sld [smem:[#allocation2]]
    %v34 = vstv %s33
    %vm35 = vcmask 261120
    %v37 = vsel %vm35, %v30, 0
    %v40 = vsel %vm35, %v31, 0
    %v43 = vsel %vm35, %v32, 0
    %45 = vmatprep.subr.mxu0 0.0
    %46 = vmatpush1.xpose.msra.mxu0 %v40
    %47 = vmatprep.subr.mxu0 0.0
    %48 = vmatpush1.xpose.msra.mxu0 %v43
    %49 = vmatprep.subr.mxu0 0.0
    %50 = vmatpush1.xpose.msra.mxu0 0.0
    %51 = vmatprep.subr.mxu0 0.0
    %52 = vmatpush1.xpose.msra.mxu0 0.0
    %53 = vmatprep.subr.mxu0 0.0
    %54 = vmatpush1.xpose.msra.mxu0 0.0
    %55 = vmatprep.subr.mxu0 0.0
    %56 = vmatpush1.xpose.msra.mxu0 0.0
    %57 = vmatprep.subr.mxu0 0.0
    %58 = vmatpush1.xpose.msra.mxu0 0.0
    %59 = vmatprep.subr.mxu0 0.0
    %60 = vmatpush1.xpose.msra.mxu0 0.0
    %61 = vmatprep.subr.mxu0 0.0
    %62 = vmatpush1.xpose.msra.mxu0 0.0
    %63 = vmatprep.subr.mxu0 0.0
    %64 = vmatpush1.xpose.msra.mxu0 0.0
    %65 = vmatprep.subr.mxu0 0.0
    %66 = vmatpush1.xpose.msra.mxu0 0.0
    %67 = vmatprep.subr.mxu0 0.0
    %68 = vmatpush1.xpose.msra.mxu0 0.0
    %69 = vmatprep.subr.mxu0 0.0
    %70 = vmatpush1.xpose.msra.mxu0 0.0
    %71 = vmatprep.subr.mxu0 0.0
    %72 = vmatpush1.xpose.msra.mxu0 0.0
    %73 = vmatprep.subr.mxu0 0.0
    %74 = vmatpush1.xpose.msra.mxu0 0.0
    %75 = vmatprep.subr.mxu0 0.0
    %76 = vmatpush1.xpose.msra.mxu0 0.0
    %77 = vmatprep.subr.mxu0 0.0
    %78 = vmatpush1.xpose.msra.mxu0 0.0
    %79 = vmatprep.subr.mxu0 0.0
    %80 = vmatpush1.xpose.msra.mxu0 0.0
    %81 = vmatprep.subr.mxu0 0.0
    %82 = vmatpush1.xpose.msra.mxu0 0.0
    %83 = vmatprep.subr.mxu0 0.0
    %84 = vmatpush1.xpose.msra.mxu0 0.0
    %85 = vmatprep.subr.mxu0 0.0
    %86 = vmatpush1.xpose.msra.mxu0 0.0
    %87 = vmatprep.subr.mxu0 0.0
    %88 = vmatpush1.xpose.msra.mxu0 0.0
    %89 = vmatprep.subr.mxu0 0.0
    %90 = vmatpush1.xpose.msra.mxu0 0.0
    %91 = vmatprep.subr.mxu0 0.0
    %92 = vmatpush1.xpose.msra.mxu0 0.0
    %93 = vmatprep.subr.mxu0 0.0
    %94 = vmatpush1.xpose.msra.mxu0 0.0
    %95 = vmatprep.subr.mxu0 0.0
    %96 = vmatpush1.xpose.msra.mxu0 0.0
    %97 = vmatprep.subr.mxu0 0.0
    %98 = vmatpush1.xpose.msra.mxu0 0.0
    %99 = vmatprep.subr.mxu0 0.0
    %100 = vmatpush1.xpose.msra.mxu0 0.0
    %101 = vmatprep.subr.mxu0 0.0
    %102 = vmatpush1.xpose.msra.mxu0 0.0
    %103 = vmatprep.subr.mxu0 0.0
    %104 = vmatpush1.xpose.msra.mxu0 0.0
    %105 = vmatprep.subr.mxu0 0.0
    %106 = vmatpush1.xpose.msra.mxu0 0.0
    %107 = vmatprep.subr.mxu0 0.0
    %108 = vmatpush1.xpose.msra.mxu0 0.0
    %109 = vmatprep.mubr.f32.mxu0 0.0
    %110 = vmatmul.mubr.f32.gmra.mrb[0].mxu0 %v37
    %v111 = vpop.f32.mrb[0].mxu0
    %v112 = vadd.f32 %v34, %v111
    %v113 = vpop.f32.mrb[0].mxu0
    %114 = vdwg.mxu0
    %vm115 = vcmask 122880
    %116 = vst.msk [vmem:[#allocation6] sm:$0x1] %vm115, %v112
    // Predicated region
    $region18: #{tpu_custom_call.1} parent=1 // pred_check
      _
    $region19: #{tpu_custom_call.1} parent=1 // pred_check_branch
      %118 = sbr.rel (0) target = $region21
    $region20: #{tpu_custom_call.1} parent=1 // pred_region
      %s120 = ssub.s32 16, 16
      %121 = vsyncadd [#allocation5], %s120
      %s123 = sshll.u32 [#allocation6], 4
      %s124 = int_to_ptr.vmem [resolvable:$true] %s123
      %126 = dma.vmem_to_hbm [thread:$0]  %s124, 16, %s3, [#allocation5]
    $region21: #{tpu_custom_call.1} parent=1 // pred_fallthru
      _
    // Predicated region
    $region22: #{tpu_custom_call.1} parent=1 // pred_check
      _
    $region23: #{tpu_custom_call.1} parent=1 // pred_check_branch
      %128 = sbr.rel (0) target = $region25
    $region24: #{tpu_custom_call.1} parent=1 // pred_region
      %129 = dma.done [#allocation5], 16
    $region25: #{tpu_custom_call.1} parent=1 // pred_fallthru
      _
    %130 = vsyncpa [#allocation4], 1
    %131 = vsyncpa [#allocation5], 1

</llo_original>
